<compile_context>
chip_gen: v5e
topology: v5e:2x2
jax: 0.10.0
libtpu: 0.0.40
codegen_flags: <defaults>
</compile_context>

<pallas_src>
import functools

import jax
import jax.numpy as jnp
import numpy as np
from jax import lax
from jax.experimental import pallas as pl
from jax.experimental.pallas import tpu as pltpu


def _basic_block_kernel(x_ref, w1_ref, w2_ref, b1_ref, b2_ref, out_ref, *, H):
    # x_ref:   (H, N*W*C)            f32  input rows (also the residual)
    # w1_ref:  (3*N*W*C, N*W*C)      fused banded conv1 slab (BN1 folded, block-diag over N)
    # w2_ref:  (3*N*W*C, N*W*C)      fused banded conv2 slab (BN2 folded, block-diag over N)
    # b1/b2:   (1, N*W*C)            f32  folded BN biases tiled over N*W
    # out_ref: (H, N*W*C)            f32
    x = x_ref[...]                                                   # f32, stays resident
    h_idx = lax.broadcasted_iota(jnp.int32, (H, 1), 0)               # row masks = h padding

    def conv3x3(inp, w_ref, b_ref):
        # dy taps via sublane rolls (XLU slot) + row masks, then ONE fused MXU matmul with
        # K = 3*N*W*C.  dx taps + width padding + batch block-diag are baked into the slab.
        up = jnp.where(h_idx > 0, pltpu.roll(inp, shift=1, axis=0), 0.0)        # row h-1
        dn = jnp.where(h_idx < H - 1, pltpu.roll(inp, shift=H - 1, axis=0), 0.0)  # row h+1
        op = jnp.concatenate([inp, up, dn], axis=-1).astype(w_ref.dtype)  # single cast
        return jnp.dot(op, w_ref[...], preferred_element_type=jnp.float32) + b_ref[...]

    y = jnp.maximum(conv3x3(x, w1_ref, b1_ref), 0.0)                 # conv1 + bn1 + relu
    z = conv3x3(y, w2_ref, b2_ref)                                   # conv2 + bn2
    out_ref[...] = jnp.maximum(z + x, 0.0).astype(out_ref.dtype)     # + identity, relu


def prepare_basic_block_params(w1, w2, bn1, bn2, N, W, eps=1e-5,
                               compute_dtype=jnp.bfloat16):
    """Precompute (once, at model init) the fused banded weight slabs and biases.

    w1/w2: HWIO (3,3,Ci,Co); bn*: dict(gamma,beta,mean,var); N = batch, W = spatial width.
    """
    Cin, Cout = w1.shape[2], w1.shape[3]
    assert Cin == Cout, "identity shortcut requires in_planes == out_planes"

    def fold(bn):
        scale = bn["gamma"] / jnp.sqrt(bn["var"] + eps)
        bias = bn["beta"] - bn["mean"] * scale
        return scale, bias

    s1, b1 = fold(bn1)
    s2, b2 = fold(bn2)

    # Fold BN scale into the conv weights: conv(x, w) * s + b == conv(x, w * s) + b.
    w1f = w1.astype(jnp.float32) * s1[None, None, None, :]
    w2f = w2.astype(jnp.float32) * s2[None, None, None, :]

    # placement[dx, ws, w] = 1 iff ws == w + dx - 1 and in range  (dx taps + width padding)
    placement = np.zeros((3, W, W), np.float32)
    for dx in range(3):
        for w in range(W):
            ws = w + dx - 1
            if 0 <= ws < W:
                placement[dx, ws, w] = 1.0
    P = jnp.asarray(placement)
    eyeN = jnp.eye(N, dtype=jnp.float32)

    def fused_slab(wf):
        ci, co = wf.shape[2], wf.shape[3]
        # per-image banded slab: (3, W*ci, W*co)
        band = jnp.einsum("xsw,yxio->ysiwo", P, wf).reshape(3, W * ci, W * co)
        # K-block order must match the kernel's concat([same, up, dn]) == taps [dy=1,0,2]
        band = band[jnp.array([1, 0, 2])]
        # block-diagonal over batch images (batch lives on the lane axis)
        blk = jnp.einsum("nm,yab->ynamb", eyeN, band)
        return blk.reshape(3 * N * W * ci, N * W * co).astype(compute_dtype)

    w1s = fused_slab(w1f)
    w2s = fused_slab(w2f)
    b1t = jnp.tile(b1.astype(jnp.float32), N * W).reshape(1, N * W * Cout)
    b2t = jnp.tile(b2.astype(jnp.float32), N * W).reshape(1, N * W * Cout)
    return dict(w1s=w1s, w2s=w2s, b1t=b1t, b2t=b2t, N=N, W=W, C=Cout)


def basic_block_pallas(x_nhwc, params):
    """Per-forward path: layout to (H, N*W*C), one pallas_call, layout back."""
    N, H, W, C = x_nhwc.shape
    assert N == params["N"] and W == params["W"] and C == params["C"]
    NWC = N * W * C

    # Lane-dense 2-D layout: rows = H, lanes = N*W*C (== 128 at the test shape).
    x2d = jnp.transpose(x_nhwc.astype(jnp.float32), (1, 0, 2, 3)).reshape(H, NWC)

    w1s, w2s, b1t, b2t = params["w1s"], params["w2s"], params["b1t"], params["b2t"]

    itemsize = jnp.dtype(w1s.dtype).itemsize
    flops = 2 * 2 * H * (3 * NWC) * NWC                      # 2 convs, fused-K matmuls
    bytes_accessed = (x2d.size * 4 + (w1s.size + w2s.size) * itemsize
                      + (b1t.size + b2t.size) * 4 + H * NWC * 4)

    out2d = pl.pallas_call(
        functools.partial(_basic_block_kernel, H=H),
        out_shape=jax.ShapeDtypeStruct((H, NWC), jnp.float32),
        in_specs=[pl.BlockSpec(memory_space=pltpu.MemorySpace.VMEM)] * 5,
        out_specs=pl.BlockSpec(memory_space=pltpu.MemorySpace.VMEM),
        compiler_params=pltpu.CompilerParams(
            vmem_limit_bytes=32 * 1024 * 1024),
        cost_estimate=pl.CostEstimate(flops=flops, transcendentals=0,
                                      bytes_accessed=bytes_accessed),
    )(x2d, w1s, w2s, b1t, b2t)

    return jnp.transpose(out2d.reshape(H, N, W, C), (1, 0, 2, 3))


def basic_block_reference(x_nhwc, w1, w2, bn1, bn2, eps=1e-5):
    """Pure-JAX reference matching the PyTorch forward (eval-mode BN)."""
    def conv(x, w):
        return lax.conv_general_dilated(
            x, w, window_strides=(1, 1), padding="SAME",
            dimension_numbers=("NHWC", "HWIO", "NHWC"))

    def bn(x, p):
        scale = p["gamma"] / jnp.sqrt(p["var"] + eps)
        bias = p["beta"] - p["mean"] * scale
        return x * scale + bias

    out = jax.nn.relu(bn(conv(x_nhwc, w1), bn1))
    out = bn(conv(out, w2), bn2)
    out = jax.nn.relu(out + x_nhwc)
    return out


if __name__ == "__main__":
    # small shapes: batch=2, planes=4, spatial=16x16  ->  lanes = N*W*C = 128 (fully dense)
    N, C, H, W = 2, 4, 16, 16
    key = jax.random.PRNGKey(0)
    kx, kw1, kw2, kb1, kb2 = jax.random.split(key, 5)

    # PyTorch-style NCHW input -> NHWC for the kernel
    x_nchw = jax.random.normal(kx, (N, C, H, W), jnp.float32)
    x_nhwc = jnp.transpose(x_nchw, (0, 2, 3, 1))

    # conv weights (HWIO), bias=False as in conv3x3
    w1 = 0.1 * jax.random.normal(kw1, (3, 3, C, C), jnp.float32)
    w2 = 0.1 * jax.random.normal(kw2, (3, 3, C, C), jnp.float32)

    def make_bn(k):
        k1, k2, k3, k4 = jax.random.split(k, 4)
        return dict(
            gamma=1.0 + 0.1 * jax.random.normal(k1, (C,), jnp.float32),
            beta=0.1 * jax.random.normal(k2, (C,), jnp.float32),
            mean=0.1 * jax.random.normal(k3, (C,), jnp.float32),
            var=jax.random.uniform(k4, (C,), jnp.float32, 0.5, 1.5),
        )

    bn1 = make_bn(kb1)
    bn2 = make_bn(kb2)

    ref = basic_block_reference(x_nhwc, w1, w2, bn1, bn2)

    # f32 MXU operands: tight tolerance vs. the reference.
    params_f32 = prepare_basic_block_params(w1, w2, bn1, bn2, N, W,
                                            compute_dtype=jnp.float32)
    out = jax.block_until_ready(basic_block_pallas(x_nhwc, params_f32))
    np.testing.assert_allclose(np.asarray(out), np.asarray(ref),
                               rtol=1e-4, atol=1e-4)

    # default bf16 MXU operands (native MXU path, f32 accumulation): looser tolerance.
    params_bf16 = prepare_basic_block_params(w1, w2, bn1, bn2, N, W)
    out_bf16 = jax.block_until_ready(basic_block_pallas(x_nhwc, params_bf16))
    np.testing.assert_allclose(np.asarray(out_bf16), np.asarray(ref),
                               rtol=5e-2, atol=5e-2)

    print("KERNEL_OK")
</pallas_src>

<mosaic_0001>
module attributes {stable_mosaic.version = 11 : i64} {
  func.func @_basic_block_kernel(%arg0: memref<16x128xf32, #tpu.memory_space<vmem>>, %arg1: memref<384x128xf32, #tpu.memory_space<vmem>>, %arg2: memref<384x128xf32, #tpu.memory_space<vmem>>, %arg3: memref<1x128xf32, #tpu.memory_space<vmem>>, %arg4: memref<1x128xf32, #tpu.memory_space<vmem>>, %arg5: memref<16x128xf32, #tpu.memory_space<vmem>>) attributes {dimension_semantics = [], scalar_prefetch = 0 : i64, scratch_operands = 0 : i64, tpu.core_type = #tpu.core_type<tc>} {
    %c0 = arith.constant 0 : index
    %c0_0 = arith.constant 0 : index
    %0 = vector.load %arg0[%c0, %c0_0] : memref<16x128xf32, #tpu.memory_space<vmem>>, vector<16x128xf32>
    %1 = tpu.iota {dimensions = array<i32: 0>} : vector<16x1xi32>
    %c0_i32 = arith.constant 0 : i32
    %2 = vector.broadcast %c0_i32 : i32 to vector<16x1xi32>
    %3 = arith.cmpi sgt, %1, %2 : vector<16x1xi32>
    %c1_i32 = arith.constant 1 : i32
    %4 = tpu.dynamic_rotate %0 by %c1_i32 dim 0 : vector<16x128xf32>, i32 -> vector<16x128xf32>
    %cst = arith.constant 0.000000e+00 : f32
    %5 = vector.shape_cast %3 : vector<16x1xi1> to vector<16x1xi1>
    %6 = vector.broadcast %5 : vector<16x1xi1> to vector<16x128xi1>
    %7 = vector.broadcast %cst : f32 to vector<16x128xf32>
    %8 = arith.select %6, %4, %7 : vector<16x128xi1>, vector<16x128xf32>
    %c15_i32 = arith.constant 15 : i32
    %9 = vector.broadcast %c15_i32 : i32 to vector<16x1xi32>
    %10 = arith.cmpi slt, %1, %9 : vector<16x1xi32>
    %c15_i32_1 = arith.constant 15 : i32
    %11 = tpu.dynamic_rotate %0 by %c15_i32_1 dim 0 : vector<16x128xf32>, i32 -> vector<16x128xf32>
    %cst_2 = arith.constant 0.000000e+00 : f32
    %12 = vector.shape_cast %10 : vector<16x1xi1> to vector<16x1xi1>
    %13 = vector.broadcast %12 : vector<16x1xi1> to vector<16x128xi1>
    %14 = vector.broadcast %cst_2 : f32 to vector<16x128xf32>
    %15 = arith.select %13, %11, %14 : vector<16x128xi1>, vector<16x128xf32>
    %16 = tpu.concatenate %0, %8, %15 in 1 : vector<16x128xf32>, vector<16x128xf32>, vector<16x128xf32> -> vector<16x384xf32>
    %c0_3 = arith.constant 0 : index
    %c0_4 = arith.constant 0 : index
    %17 = vector.load %arg1[%c0_3, %c0_4] : memref<384x128xf32, #tpu.memory_space<vmem>>, vector<384x128xf32>
    %cst_5 = arith.constant dense<0.000000e+00> : vector<16x128xf32>
    %18 = tpu.matmul %16, %17, %cst_5 {dimension_numbers = #tpu.dot_dimension_numbers<[1], [0], [0], [1], [0, 0, 1, 1], [], []>} : vector<16x384xf32>, vector<384x128xf32>, vector<16x128xf32> -> vector<16x128xf32>
    %c0_6 = arith.constant 0 : index
    %c0_7 = arith.constant 0 : index
    %19 = vector.load %arg3[%c0_6, %c0_7] : memref<1x128xf32, #tpu.memory_space<vmem>>, vector<1x128xf32>
    %20 = vector.broadcast %19 : vector<1x128xf32> to vector<16x128xf32>
    %21 = arith.addf %18, %20 : vector<16x128xf32>
    %cst_8 = arith.constant 0.000000e+00 : f32
    %22 = vector.broadcast %cst_8 : f32 to vector<16x128xf32>
    %23 = arith.maximumf %21, %22 : vector<16x128xf32>
    %c0_i32_9 = arith.constant 0 : i32
    %24 = vector.broadcast %c0_i32_9 : i32 to vector<16x1xi32>
    %25 = arith.cmpi sgt, %1, %24 : vector<16x1xi32>
    %c1_i32_10 = arith.constant 1 : i32
    %26 = tpu.dynamic_rotate %23 by %c1_i32_10 dim 0 : vector<16x128xf32>, i32 -> vector<16x128xf32>
    %cst_11 = arith.constant 0.000000e+00 : f32
    %27 = vector.shape_cast %25 : vector<16x1xi1> to vector<16x1xi1>
    %28 = vector.broadcast %27 : vector<16x1xi1> to vector<16x128xi1>
    %29 = vector.broadcast %cst_11 : f32 to vector<16x128xf32>
    %30 = arith.select %28, %26, %29 : vector<16x128xi1>, vector<16x128xf32>
    %c15_i32_12 = arith.constant 15 : i32
    %31 = vector.broadcast %c15_i32_12 : i32 to vector<16x1xi32>
    %32 = arith.cmpi slt, %1, %31 : vector<16x1xi32>
    %c15_i32_13 = arith.constant 15 : i32
    %33 = tpu.dynamic_rotate %23 by %c15_i32_13 dim 0 : vector<16x128xf32>, i32 -> vector<16x128xf32>
    %cst_14 = arith.constant 0.000000e+00 : f32
    %34 = vector.shape_cast %32 : vector<16x1xi1> to vector<16x1xi1>
    %35 = vector.broadcast %34 : vector<16x1xi1> to vector<16x128xi1>
    %36 = vector.broadcast %cst_14 : f32 to vector<16x128xf32>
    %37 = arith.select %35, %33, %36 : vector<16x128xi1>, vector<16x128xf32>
    %38 = tpu.concatenate %23, %30, %37 in 1 : vector<16x128xf32>, vector<16x128xf32>, vector<16x128xf32> -> vector<16x384xf32>
    %c0_15 = arith.constant 0 : index
    %c0_16 = arith.constant 0 : index
    %39 = vector.load %arg2[%c0_15, %c0_16] : memref<384x128xf32, #tpu.memory_space<vmem>>, vector<384x128xf32>
    %cst_17 = arith.constant dense<0.000000e+00> : vector<16x128xf32>
    %40 = tpu.matmul %38, %39, %cst_17 {dimension_numbers = #tpu.dot_dimension_numbers<[1], [0], [0], [1], [0, 0, 1, 1], [], []>} : vector<16x384xf32>, vector<384x128xf32>, vector<16x128xf32> -> vector<16x128xf32>
    %c0_18 = arith.constant 0 : index
    %c0_19 = arith.constant 0 : index
    %41 = vector.load %arg4[%c0_18, %c0_19] : memref<1x128xf32, #tpu.memory_space<vmem>>, vector<1x128xf32>
    %42 = vector.broadcast %41 : vector<1x128xf32> to vector<16x128xf32>
    %43 = arith.addf %40, %42 : vector<16x128xf32>
    %44 = arith.addf %43, %0 : vector<16x128xf32>
    %cst_20 = arith.constant 0.000000e+00 : f32
    %45 = vector.broadcast %cst_20 : f32 to vector<16x128xf32>
    %46 = arith.maximumf %44, %45 : vector<16x128xf32>
    %c0_21 = arith.constant 0 : index
    %c0_22 = arith.constant 0 : index
    %47 = vector.load %arg5[%c0_21, %c0_22] : memref<16x128xf32, #tpu.memory_space<vmem>>, vector<16x128xf32>
    tpu.vector_store %arg5[%c0_21, %c0_22], %46 {strides = array<i32>} : memref<16x128xf32, #tpu.memory_space<vmem>>, vector<16x128xf32>,
    return
  }
}

</mosaic_0001>

<llo_original>
// kernel: tpu_custom_call.1
$region0: #{tpu_custom_call.1}
  #allocation0 [shape = 'u32[]', space=smem, size = 0x4, offset = 0x4, fixed_abs, tag = 'smem constant byte address 0x4 - core index']
  #allocation1 [shape = 'u32[72,128]{1,0:T(1,128)}', space=vmem, size = 0x9000, scoped, tag = 'internal scratch']
  %s0 = inlined_call_operand.hbm [shape: f32[16,128], index: 0, kind: input, shape index: {}]
  %s1 = inlined_call_operand.hbm [shape: f32[384,128], index: 1, kind: input, shape index: {}]
  %s2 = inlined_call_operand.hbm [shape: f32[384,128], index: 2, kind: input, shape index: {}]
  %s3 = inlined_call_operand.vmem [shape: f32[1,128], index: 3, kind: input, shape index: {}]
  %s4 = inlined_call_operand.vmem [shape: f32[1,128], index: 4, kind: input, shape index: {}]
  %s5 = inlined_call_operand.hbm [shape: f32[16,128], index: 5, kind: output, shape index: {}]
  %s6 = sld [smem:[#allocation0]]
  $region42: #{tpu_custom_call.1} parent=0
    _
  %s8 = ssub.s32 1, %s6
  %s9 = scalar_select 0, %s8, %s6
  $region1: #{tpu_custom_call.1} parent=0
    #allocation2 [shape = 'u8[8192]{0}', space=vmem, size = 0x2000, scoped, tag = 'input window, operand 0, single buffered']
    #allocation3 [shape = 's32[1]{0}', space=sflag, size = 0x4, scoped, tag = 'scoped memory for tpu_custom_call.1']
    #allocation4 [shape = 's32[1]{0}', space=sflag, size = 0x4, scoped, tag = 'scoped memory for tpu_custom_call.1']
    #allocation5 [shape = 'u8[196608]{0}', space=vmem, size = 0x30000, scoped, tag = 'input window, operand 1, single buffered']
    #allocation6 [shape = 's32[1]{0}', space=sflag, size = 0x4, scoped, tag = 'scoped memory for tpu_custom_call.1']
    #allocation7 [shape = 'u8[196608]{0}', space=vmem, size = 0x30000, scoped, tag = 'input window, operand 2, single buffered']
    #allocation8 [shape = 'u8[8192]{0}', space=vmem, size = 0x2000, scoped, tag = 'output window, operand 0, single buffered']
    %10 = vsyncpa [#allocation3], 0
    %11 = vsyncpa [#allocation6], 0
    %12 = vsyncpa [#allocation4], 0
    // Predicated region
    $region2: #{tpu_custom_call.1} parent=1 // pred_check
      _
    $region3: #{tpu_custom_call.1} parent=1 // pred_check_branch
      %14 = sbr.rel (0) target = $region5
    $region4: #{tpu_custom_call.1} parent=1 // pred_region
      %16 = vsyncadd [#allocation3], 0
      %s17 = sshll.u32 %s0, 4
      %s18 = int_to_ptr.hbm [resolvable:$true] %s17
      %s19 = sshll.u32 [#allocation2], 4
      %s20 = int_to_ptr.vmem [resolvable:$true] %s19
      %25 = dma.hbm_to_vmem [thread:$0]  %s18, 256, %s20, [#allocation3], 128, 128, 8
    $region5: #{tpu_custom_call.1} parent=1 // pred_fallthru
      _
    // Predicated region
    $region6: #{tpu_custom_call.1} parent=1 // pred_check
      _
    $region7: #{tpu_custom_call.1} parent=1 // pred_check_branch
      %27 = sbr.rel (0) target = $region9
    $region8: #{tpu_custom_call.1} parent=1 // pred_region
      %29 = vsyncadd [#allocation6], 0
      %s30 = sshll.u32 %s1, 4
      %s31 = int_to_ptr.hbm [resolvable:$true] %s30
      %s32 = sshll.u32 [#allocation5], 4
      %s33 = int_to_ptr.vmem [resolvable:$true] %s32
      %38 = dma.hbm_to_vmem [thread:$0]  %s31, 6144, %s33, [#allocation6], 128, 128, 8
    $region9: #{tpu_custom_call.1} parent=1 // pred_fallthru
      _
    // Predicated region
    $region10: #{tpu_custom_call.1} parent=1 // pred_check
      _
    $region11: #{tpu_custom_call.1} parent=1 // pred_check_branch
      %40 = sbr.rel (0) target = $region13
    $region12: #{tpu_custom_call.1} parent=1 // pred_region
      %42 = vsyncadd [#allocation6], 0
      %s43 = sshll.u32 %s2, 4
      %s44 = int_to_ptr.hbm [resolvable:$true] %s43
      %s45 = sshll.u32 [#allocation7], 4
      %s46 = int_to_ptr.vmem [resolvable:$true] %s45
      %51 = dma.hbm_to_vmem [thread:$0]  %s44, 6144, %s46, [#allocation6], 128, 128, 8
    $region13: #{tpu_custom_call.1} parent=1 // pred_fallthru
      _
    // Predicated region
    $region14: #{tpu_custom_call.1} parent=1 // pred_check
      _
    $region15: #{tpu_custom_call.1} parent=1 // pred_check_branch
      %53 = sbr.rel (0) target = $region17
    $region16: #{tpu_custom_call.1} parent=1 // pred_region
      _
    $region17: #{tpu_custom_call.1} parent=1 // pred_fallthru
      _
    // Predicated region
    $region18: #{tpu_custom_call.1} parent=1 // pred_check
      _
    $region19: #{tpu_custom_call.1} parent=1 // pred_check_branch
      %55 = sbr.rel (0) target = $region21
    $region20: #{tpu_custom_call.1} parent=1 // pred_region
      _
    $region21: #{tpu_custom_call.1} parent=1 // pred_fallthru
      _
    // Predicated region
    $region22: #{tpu_custom_call.1} parent=1 // pred_check
      _
    $region23: #{tpu_custom_call.1} parent=1 // pred_check_branch
      %57 = sbr.rel (0) target = $region25
    $region24: #{tpu_custom_call.1} parent=1 // pred_region
      %59 = dma.done [#allocation3], 256
    $region25: #{tpu_custom_call.1} parent=1 // pred_fallthru
      _
    // Predicated region
    $region26: #{tpu_custom_call.1} parent=1 // pred_check
      _
    $region27: #{tpu_custom_call.1} parent=1 // pred_check_branch
      %61 = sbr.rel (0) target = $region29
    $region28: #{tpu_custom_call.1} parent=1 // pred_region
      %63 = dma.done [#allocation6], 6144
    $region29: #{tpu_custom_call.1} parent=1 // pred_fallthru
      _
    // Predicated region
    $region30: #{tpu_custom_call.1} parent=1 // pred_check
      _
    $region31: #{tpu_custom_call.1} parent=1 // pred_check_branch
      %65 = sbr.rel (0) target = $region33
    $region32: #{tpu_custom_call.1} parent=1 // pred_region
      %67 = dma.done [#allocation6], 6144
    $region33: #{tpu_custom_call.1} parent=1 // pred_fallthru
      _
    %v68 = vld [vmem:[#allocation2] sm:$0xff]
    %v69 = vld [vmem:[#allocation2 + $0x8] sm:$0xff]
    %v70 = vlaneseq
    %v71 = vshrl.u32 %v70, 7
    %v72 = vadd.s32 %v71, 8
    %vm73 = vcmp.gt.s32.totalorder %v71, 0
    %vm74 = vcmp.gt.s32.totalorder %v72, 0
    %v75 = vrot.slane %v68, 7
    %v76 = vrot.slane %v69, 7
    %vm77 = vcmp.lt.s32.totalorder %v71, 1
    %v78 = vsel %vm77, %v75, %v76
    %v79 = vsel %vm77, %v76, %v75
    %v80 = vsel %vm73, 1, 0
    %v81 = vsel %vm74, 1, 0
    %vm82 = vcmp.eq.s32.totalorder %v80, 1
    %vm83 = vcmp.eq.s32.totalorder %v81, 1
    %v84 = vsel %vm82, %v79, 0.0
    %v85 = vsel %vm83, %v78, 0.0
    %vm86 = vcmp.lt.s32.totalorder %v71, 15
    %vm87 = vcmp.lt.s32.totalorder %v72, 15
    %v88 = vrot.slane %v68, 1
    %v89 = vrot.slane %v69, 1
    %vm90 = vcmp.lt.s32.totalorder %v71, 7
    %v91 = vsel %vm90, %v88, %v89
    %v92 = vsel %vm90, %v89, %v88
    %v93 = vsel %vm86, 1, 0
    %v94 = vsel %vm87, 1, 0
    %vm95 = vcmp.eq.s32.totalorder %v93, 1
    %vm96 = vcmp.eq.s32.totalorder %v94, 1
    %v97 = vsel %vm95, %v91, 0.0
    %v98 = vsel %vm96, %v92, 0.0
    %v99 = vld [vmem:[#allocation5] sm:$0xff]
    %v100 = vld [vmem:[#allocation5 + $0x8] sm:$0xff]
    %v101 = vld [vmem:[#allocation5 + $0x10] sm:$0xff]
    %v102 = vld [vmem:[#allocation5 + $0x18] sm:$0xff]
    %v103 = vld [vmem:[#allocation5 + $0x20] sm:$0xff]
    %v104 = vld [vmem:[#allocation5 + $0x28] sm:$0xff]
    %v105 = vld [vmem:[#allocation5 + $0x30] sm:$0xff]
    %v106 = vld [vmem:[#allocation5 + $0x38] sm:$0xff]
    %v107 = vld [vmem:[#allocation5 + $0x40] sm:$0xff]
    %v108 = vld [vmem:[#allocation5 + $0x48] sm:$0xff]
    %v109 = vld [vmem:[#allocation5 + $0x50] sm:$0xff]
    %v110 = vld [vmem:[#allocation5 + $0x58] sm:$0xff]
    %v111 = vld [vmem:[#allocation5 + $0x60] sm:$0xff]
    %v112 = vld [vmem:[#allocation5 + $0x68] sm:$0xff]
    %v113 = vld [vmem:[#allocation5 + $0x70] sm:$0xff]
    %v114 = vld [vmem:[#allocation5 + $0x78] sm:$0xff]
    %v115 = vld [vmem:[#allocation5 + $0x80] sm:$0xff]
    %v116 = vld [vmem:[#allocation5 + $0x88] sm:$0xff]
    %v117 = vld [vmem:[#allocation5 + $0x90] sm:$0xff]
    %v118 = vld [vmem:[#allocation5 + $0x98] sm:$0xff]
    %v119 = vld [vmem:[#allocation5 + $0xa0] sm:$0xff]
    %v120 = vld [vmem:[#allocation5 + $0xa8] sm:$0xff]
    %v121 = vld [vmem:[#allocation5 + $0xb0] sm:$0xff]
    %v122 = vld [vmem:[#allocation5 + $0xb8] sm:$0xff]
    %v123 = vld [vmem:[#allocation5 + $0xc0] sm:$0xff]
    %v124 = vld [vmem:[#allocation5 + $0xc8] sm:$0xff]
    %v125 = vld [vmem:[#allocation5 + $0xd0] sm:$0xff]
    %v126 = vld [vmem:[#allocation5 + $0xd8] sm:$0xff]
    %v127 = vld [vmem:[#allocation5 + $0xe0] sm:$0xff]
    %v128 = vld [vmem:[#allocation5 + $0xe8] sm:$0xff]
    %v129 = vld [vmem:[#allocation5 + $0xf0] sm:$0xff]
    %v130 = vld [vmem:[#allocation5 + $0xf8] sm:$0xff]
    %v131 = vld [vmem:[#allocation5 + $0x100] sm:$0xff]
    %v132 = vld [vmem:[#allocation5 + $0x108] sm:$0xff]
    %v133 = vld [vmem:[#allocation5 + $0x110] sm:$0xff]
    %v134 = vld [vmem:[#allocation5 + $0x118] sm:$0xff]
    %v135 = vld [vmem:[#allocation5 + $0x120] sm:$0xff]
    %v136 = vld [vmem:[#allocation5 + $0x128] sm:$0xff]
    %v137 = vld [vmem:[#allocation5 + $0x130] sm:$0xff]
    %v138 = vld [vmem:[#allocation5 + $0x138] sm:$0xff]
    %v139 = vld [vmem:[#allocation5 + $0x140] sm:$0xff]
    %v140 = vld [vmem:[#allocation5 + $0x148] sm:$0xff]
    %v141 = vld [vmem:[#allocation5 + $0x150] sm:$0xff]
    %v142 = vld [vmem:[#allocation5 + $0x158] sm:$0xff]
    %v143 = vld [vmem:[#allocation5 + $0x160] sm:$0xff]
    %v144 = vld [vmem:[#allocation5 + $0x168] sm:$0xff]
    %v145 = vld [vmem:[#allocation5 + $0x170] sm:$0xff]
    %v146 = vld [vmem:[#allocation5 + $0x178] sm:$0xff]
    %v147 = vld [vmem:[%s3] sm:$0x1]
    %v149 = vperm.slane %v147, 0
    %151 = vmatpush.msra.mxu0 %v114
    %152 = vmatpush.msra.mxu0 %v113
    %153 = vmatpush.msra.mxu0 %v112
    %154 = vmatpush.msra.mxu0 %v111
    %155 = vmatpush.msra.mxu0 %v110
    %156 = vmatpush.msra.mxu0 %v109
    %157 = vmatpush.msra.mxu0 %v108
    %158 = vmatpush.msra.mxu0 %v107
    %159 = vmatpush.msra.mxu0 %v106
    %160 = vmatpush.msra.mxu0 %v105
    %161 = vmatpush.msra.mxu0 %v104
    %162 = vmatpush.msra.mxu0 %v103
    %163 = vmatpush.msra.mxu0 %v102
    %164 = vmatpush.msra.mxu0 %v101
    %165 = vmatpush.msra.mxu0 %v100
    %166 = vmatpush.msra.mxu0 %v99
    %167 = vmatmul.f32.gmra.mxu0 %v68
    %v168 = vpop.f32.mrf.mxu0
    %v169 = vadd.f32 %v149, %v168
    %170 = vmatmul.f32.gmra.mxu0 %v69
    %v171 = vpop.f32.mrf.mxu0
    %v172 = vadd.f32 %v149, %v171
    %173 = vdwg.mxu0
    %174 = vmatpush.msra.mxu0 %v130
    %175 = vmatpush.msra.mxu0 %v129
    %176 = vmatpush.msra.mxu0 %v128
    %177 = vmatpush.msra.mxu0 %v127
    %178 = vmatpush.msra.mxu0 %v126
    %179 = vmatpush.msra.mxu0 %v125
    %180 = vmatpush.msra.mxu0 %v124
    %181 = vmatpush.msra.mxu0 %v123
    %182 = vmatpush.msra.mxu0 %v122
    %183 = vmatpush.msra.mxu0 %v121
    %184 = vmatpush.msra.mxu0 %v120
    %185 = vmatpush.msra.mxu0 %v119
    %186 = vmatpush.msra.mxu0 %v118
    %187 = vmatpush.msra.mxu0 %v117
    %188 = vmatpush.msra.mxu0 %v116
    %189 = vmatpush.msra.mxu0 %v115
    %190 = vmatmul.f32.gmra.mxu0 %v84
    %v191 = vpop.f32.mrf.mxu0
    %v192 = vadd.f32 %v169, %v191
    %193 = vmatmul.f32.gmra.mxu0 %v85
    %v194 = vpop.f32.mrf.mxu0
    %v195 = vadd.f32 %v172, %v194
    %196 = vdwg.mxu0
    %197 = vmatpush.msra.mxu0 %v146
    %198 = vmatpush.msra.mxu0 %v145
    %199 = vmatpush.msra.mxu0 %v144
    %200 = vmatpush.msra.mxu0 %v143
    %201 = vmatpush.msra.mxu0 %v142
    %202 = vmatpush.msra.mxu0 %v141
    %203 = vmatpush.msra.mxu0 %v140
    %204 = vmatpush.msra.mxu0 %v139
    %205 = vmatpush.msra.mxu0 %v138
    %206 = vmatpush.msra.mxu0 %v137
    %207 = vmatpush.msra.mxu0 %v136
    %208 = vmatpush.msra.mxu0 %v135
    %209 = vmatpush.msra.mxu0 %v134
    %210 = vmatpush.msra.mxu0 %v133
    %211 = vmatpush.msra.mxu0 %v132
    %212 = vmatpush.msra.mxu0 %v131
    %213 = vmatmul.f32.gmra.mxu0 %v97
    %v214 = vpop.f32.mrf.mxu0
    %v215 = vadd.f32 %v192, %v214
    %216 = vmatmul.f32.gmra.mxu0 %v98
    %v217 = vpop.f32.mrf.mxu0
    %v218 = vadd.f32 %v195, %v217
    %219 = vdwg.mxu0
    %v220 = vmax.f32 %v215, 0.0
    %v221 = vmax.f32 %v218, 0.0
    %v222 = vrot.slane %v220, 7
    %v223 = vrot.slane %v221, 7
    %v224 = vsel %vm77, %v222, %v223
    %v225 = vsel %vm77, %v223, %v222
    %v226 = vsel %vm82, %v225, 0.0
    %v227 = vsel %vm83, %v224, 0.0
    %v228 = vrot.slane %v220, 1
    %v229 = vrot.slane %v221, 1
    %v230 = vsel %vm90, %v228, %v229
    %v231 = vsel %vm90, %v229, %v228
    %v232 = vsel %vm95, %v230, 0.0
    %v233 = vsel %vm96, %v231, 0.0
    %v234 = vld [vmem:[#allocation7] sm:$0xff]
    %v235 = vld [vmem:[#allocation7 + $0x8] sm:$0xff]
    %v236 = vld [vmem:[#allocation7 + $0x10] sm:$0xff]
    %v237 = vld [vmem:[#allocation7 + $0x18] sm:$0xff]
    %v238 = vld [vmem:[#allocation7 + $0x20] sm:$0xff]
    %v239 = vld [vmem:[#allocation7 + $0x28] sm:$0xff]
    %v240 = vld [vmem:[#allocation7 + $0x30] sm:$0xff]
    %v241 = vld [vmem:[#allocation7 + $0x38] sm:$0xff]
    %v242 = vld [vmem:[#allocation7 + $0x40] sm:$0xff]
    %v243 = vld [vmem:[#allocation7 + $0x48] sm:$0xff]
    %v244 = vld [vmem:[#allocation7 + $0x50] sm:$0xff]
    %v245 = vld [vmem:[#allocation7 + $0x58] sm:$0xff]
    %v246 = vld [vmem:[#allocation7 + $0x60] sm:$0xff]
    %v247 = vld [vmem:[#allocation7 + $0x68] sm:$0xff]
    %v248 = vld [vmem:[#allocation7 + $0x70] sm:$0xff]
    %v249 = vld [vmem:[#allocation7 + $0x78] sm:$0xff]
    %v250 = vld [vmem:[#allocation7 + $0x80] sm:$0xff]
    %v251 = vld [vmem:[#allocation7 + $0x88] sm:$0xff]
    %v252 = vld [vmem:[#allocation7 + $0x90] sm:$0xff]
    %v253 = vld [vmem:[#allocation7 + $0x98] sm:$0xff]
    %v254 = vld [vmem:[#allocation7 + $0xa0] sm:$0xff]
    %v255 = vld [vmem:[#allocation7 + $0xa8] sm:$0xff]
    %v256 = vld [vmem:[#allocation7 + $0xb0] sm:$0xff]
    %v257 = vld [vmem:[#allocation7 + $0xb8] sm:$0xff]
    %v258 = vld [vmem:[#allocation7 + $0xc0] sm:$0xff]
    %v259 = vld [vmem:[#allocation7 + $0xc8] sm:$0xff]
    %v260 = vld [vmem:[#allocation7 + $0xd0] sm:$0xff]
    %v261 = vld [vmem:[#allocation7 + $0xd8] sm:$0xff]
    %v262 = vld [vmem:[#allocation7 + $0xe0] sm:$0xff]
    %v263 = vld [vmem:[#allocation7 + $0xe8] sm:$0xff]
    %v264 = vld [vmem:[#allocation7 + $0xf0] sm:$0xff]
    %v265 = vld [vmem:[#allocation7 + $0xf8] sm:$0xff]
    %v266 = vld [vmem:[#allocation7 + $0x100] sm:$0xff]
    %v267 = vld [vmem:[#allocation7 + $0x108] sm:$0xff]
    %v268 = vld [vmem:[#allocation7 + $0x110] sm:$0xff]
    %v269 = vld [vmem:[#allocation7 + $0x118] sm:$0xff]
    %v270 = vld [vmem:[#allocation7 + $0x120] sm:$0xff]
    %v271 = vld [vmem:[#allocation7 + $0x128] sm:$0xff]
    %v272 = vld [vmem:[#allocation7 + $0x130] sm:$0xff]
    %v273 = vld [vmem:[#allocation7 + $0x138] sm:$0xff]
    %v274 = vld [vmem:[#allocation7 + $0x140] sm:$0xff]
    %v275 = vld [vmem:[#allocation7 + $0x148] sm:$0xff]
    %v276 = vld [vmem:[#allocation7 + $0x150] sm:$0xff]
    %v277 = vld [vmem:[#allocation7 + $0x158] sm:$0xff]
    %v278 = vld [vmem:[#allocation7 + $0x160] sm:$0xff]
    %v279 = vld [vmem:[#allocation7 + $0x168] sm:$0xff]
    %v280 = vld [vmem:[#allocation7 + $0x170] sm:$0xff]
    %v281 = vld [vmem:[#allocation7 + $0x178] sm:$0xff]
    %v282 = vld [vmem:[%s4] sm:$0x1]
    %v284 = vperm.slane %v282, 0
    %286 = vmatpush.msra.mxu0 %v249
    %287 = vmatpush.msra.mxu0 %v248
    %288 = vmatpush.msra.mxu0 %v247
    %289 = vmatpush.msra.mxu0 %v246
    %290 = vmatpush.msra.mxu0 %v245
    %291 = vmatpush.msra.mxu0 %v244
    %292 = vmatpush.msra.mxu0 %v243
    %293 = vmatpush.msra.mxu0 %v242
    %294 = vmatpush.msra.mxu0 %v241
    %295 = vmatpush.msra.mxu0 %v240
    %296 = vmatpush.msra.mxu0 %v239
    %297 = vmatpush.msra.mxu0 %v238
    %298 = vmatpush.msra.mxu0 %v237
    %299 = vmatpush.msra.mxu0 %v236
    %300 = vmatpush.msra.mxu0 %v235
    %301 = vmatpush.msra.mxu0 %v234
    %302 = vmatmul.f32.gmra.mxu0 %v220
    %v303 = vpop.f32.mrf.mxu0
    %v304 = vadd.f32 %v284, %v303
    %305 = vmatmul.f32.gmra.mxu0 %v221
    %v306 = vpop.f32.mrf.mxu0
    %v307 = vadd.f32 %v284, %v306
    %308 = vdwg.mxu0
    %309 = vmatpush.msra.mxu0 %v265
    %310 = vmatpush.msra.mxu0 %v264
    %311 = vmatpush.msra.mxu0 %v263
    %312 = vmatpush.msra.mxu0 %v262
    %313 = vmatpush.msra.mxu0 %v261
    %314 = vmatpush.msra.mxu0 %v260
    %315 = vmatpush.msra.mxu0 %v259
    %316 = vmatpush.msra.mxu0 %v258
    %317 = vmatpush.msra.mxu0 %v257
    %318 = vmatpush.msra.mxu0 %v256
    %319 = vmatpush.msra.mxu0 %v255
    %320 = vmatpush.msra.mxu0 %v254
    %321 = vmatpush.msra.mxu0 %v253
    %322 = vmatpush.msra.mxu0 %v252
    %323 = vmatpush.msra.mxu0 %v251
    %324 = vmatpush.msra.mxu0 %v250
    %325 = vmatmul.f32.gmra.mxu0 %v226
    %v326 = vpop.f32.mrf.mxu0
    %v327 = vadd.f32 %v304, %v326
    %328 = vmatmul.f32.gmra.mxu0 %v227
    %v329 = vpop.f32.mrf.mxu0
    %v330 = vadd.f32 %v307, %v329
    %331 = vdwg.mxu0
    %332 = vmatpush.msra.mxu0 %v281
    %333 = vmatpush.msra.mxu0 %v280
    %334 = vmatpush.msra.mxu0 %v279
    %335 = vmatpush.msra.mxu0 %v278
    %336 = vmatpush.msra.mxu0 %v277
    %337 = vmatpush.msra.mxu0 %v276
    %338 = vmatpush.msra.mxu0 %v275
    %339 = vmatpush.msra.mxu0 %v274
    %340 = vmatpush.msra.mxu0 %v273
    %341 = vmatpush.msra.mxu0 %v272
    %342 = vmatpush.msra.mxu0 %v271
    %343 = vmatpush.msra.mxu0 %v270
    %344 = vmatpush.msra.mxu0 %v269
    %345 = vmatpush.msra.mxu0 %v268
    %346 = vmatpush.msra.mxu0 %v267
    %347 = vmatpush.msra.mxu0 %v266
    %348 = vmatmul.f32.gmra.mxu0 %v232
    %v349 = vpop.f32.mrf.mxu0
    %v350 = vadd.f32 %v327, %v349
    %351 = vmatmul.f32.gmra.mxu0 %v233
    %v352 = vpop.f32.mrf.mxu0
    %v353 = vadd.f32 %v330, %v352
    %354 = vdwg.mxu0
    %v355 = vadd.f32 %v350, %v68
    %v356 = vadd.f32 %v353, %v69
    %v357 = vmax.f32 %v355, 0.0
    %v358 = vmax.f32 %v356, 0.0
    %359 = vst [vmem:[#allocation8] sm:$0xff] %v357
    %360 = vst [vmem:[#allocation8 + $0x8] sm:$0xff] %v358
    // Predicated region
    $region34: #{tpu_custom_call.1} parent=1 // pred_check
      _
    $region35: #{tpu_custom_call.1} parent=1 // pred_check_branch
      %362 = sbr.rel (0) target = $region37
    $region36: #{tpu_custom_call.1} parent=1 // pred_region
      %364 = vsyncadd [#allocation4], 0
      %s365 = sshll.u32 [#allocation8], 4
      %s366 = int_to_ptr.vmem [resolvable:$true] %s365
      %s367 = sshll.u32 %s5, 4
      %s368 = int_to_ptr.hbm [resolvable:$true] %s367
      %373 = dma.vmem_to_hbm [thread:$0]  %s366, 256, %s368, [#allocation4], 128, 128, 8
    $region37: #{tpu_custom_call.1} parent=1 // pred_fallthru
      _
    // Predicated region
    $region38: #{tpu_custom_call.1} parent=1 // pred_check
      _
    $region39: #{tpu_custom_call.1} parent=1 // pred_check_branch
      %375 = sbr.rel (0) target = $region41
    $region40: #{tpu_custom_call.1} parent=1 // pred_region
      %377 = dma.done [#allocation4], 256
    $region41: #{tpu_custom_call.1} parent=1 // pred_fallthru
      _
    %378 = vsyncpa [#allocation3], 1
    %379 = vsyncpa [#allocation6], 1
    %380 = vsyncpa [#allocation4], 1

</llo_original>
